<compile_context>
chip_gen: v5e
topology: v5e:2x2
jax: 0.10.0
libtpu: 0.0.40
codegen_flags: <defaults>
</compile_context>

<pallas_src>
import jax
import jax.numpy as jnp
from jax.experimental import pallas as pl
from jax.experimental.pallas import tpu as pltpu


def _invconv_kernel(w_ref, x_ref, o_ref):
    # w_ref: (C, C) weight, resident in VMEM (constant index map).
    # x_ref: (TN, C, T_HW) lane-dense pixel tile of TN samples.
    # o_ref: (TN, C, T_HW) output tile.
    o_ref[...] = jnp.einsum(
        "oc,nct->not", w_ref[...], x_ref[...],
        preferred_element_type=jnp.float32,
    ).astype(o_ref.dtype)


def _pick_tiles(n, c, hw, itemsize=4, target_block_bytes=2 << 20):
    """Pick (TN, T_HW) so each input block is ~2 MiB (multiple of 128 lanes).

    ~2 MiB blocks amortize the ~0.35 us per-grid-step overhead and land in the
    1-4 MiB sweet spot on v5e/v6e/v7x.  Double-buffered in+out footprint is
    <= ~4 * 2 MiB + W, safe under the 16 MiB v5e scoped-VMEM default (the
    tightest of the three generations), so no vmem_limit override is needed.
    VMEM budget uses the sublane-padded channel count ceil(C/8)*8.
    """
    padded_c = ((c + 7) // 8) * 8
    lanes_full = pl.cdiv(hw, 128) * 128
    row_bytes = padded_c * 128 * itemsize            # bytes per 128-lane group
    max_lanes = max(128, (target_block_bytes // row_bytes) * 128)
    t_hw = min(lanes_full, max_lanes)
    block_bytes = padded_c * t_hw * itemsize
    tn = int(max(1, min(n, target_block_bytes // block_bytes)))
    # Megacore: keep >= 2 grid steps along a 'parallel' axis when possible so
    # both TensorCores (v7x) get work.
    if pl.cdiv(n, tn) * pl.cdiv(hw, t_hw) < 2:
        if n >= 2:
            tn = pl.cdiv(n, 2)
        elif hw > 128:
            t_hw = pl.cdiv(pl.cdiv(hw, 128), 2) * 128
    return tn, t_hw


@jax.jit
def inv_conv2d_forward(x, weight):
    """Forward of InvConv2d.

    Args:
      x: (N, C, H, W) input, float32.
      weight: (C, C, 1, 1) conv weight (orthogonal init), float32.
    Returns:
      out: (N, C, H, W)   -- F.conv2d(x, weight) equivalent (1x1 conv).
      log_det: (N,)       -- H*W*slogdet(W)[1], repeated per batch element.
    """
    N, C, H, W = x.shape
    hw = H * W
    itemsize = jnp.dtype(x.dtype).itemsize
    w2d = weight[:, :, 0, 0]                       # (C_out, C_in)

    # Free reshape (contiguous): (N, C, H, W) -> (N, C, H*W).  No padding /
    # slicing copies: Pallas masks the tail block along both grid axes.
    x3 = x.reshape(N, C, hw)

    tn, t_hw = _pick_tiles(N, C, hw, itemsize)

    cost = pl.CostEstimate(
        flops=2 * N * hw * C * C,
        transcendentals=0,
        bytes_accessed=2 * N * C * hw * itemsize + C * C * itemsize,
    )

    out3 = pl.pallas_call(
        _invconv_kernel,
        out_shape=jax.ShapeDtypeStruct((N, C, hw), x.dtype),
        grid=(pl.cdiv(N, tn), pl.cdiv(hw, t_hw)),
        in_specs=[
            # W: full array, constant block index -> stays resident in VMEM.
            pl.BlockSpec((C, C), lambda n, t: (0, 0)),
            # x: TN samples' (C, T_HW) lane-dense slab per grid step.
            pl.BlockSpec((tn, C, t_hw), lambda n, t: (n, 0, t)),
        ],
        out_specs=pl.BlockSpec((tn, C, t_hw), lambda n, t: (n, 0, t)),
        compiler_params=pltpu.CompilerParams(
            # Both axes independent -> shards across both TensorCores on v7x.
            dimension_semantics=("parallel", "parallel"),
        ),
        cost_estimate=cost,
    )(w2d, x3)

    out = out3.reshape(N, C, H, W)

    # TODO(synk): PyTorch computes slogdet in float64; TPU has no native f64,
    # so log|det W| is computed in plain JAX float32 here.
    logabsdet = jnp.linalg.slogdet(w2d.astype(jnp.float32))[1]
    log_det = jnp.broadcast_to(jnp.float32(hw) * logabsdet, (N,))

    return out, log_det


def make_invconv_weight(in_channel, key):
    """Deterministic orthogonal (C, C, 1, 1) weight, matching torch.qr init."""
    w = jax.random.normal(key, (in_channel, in_channel), dtype=jnp.float32)
    q, _ = jnp.linalg.qr(w)
    return q[:, :, None, None]


if __name__ == "__main__":
    key = jax.random.PRNGKey(0)
    k_w, k_x = jax.random.split(key)

    N, C, H, W = 2, 4, 16, 16
    weight = make_invconv_weight(C, k_w)                     # (4, 4, 1, 1)
    x = jax.random.normal(k_x, (N, C, H, W), dtype=jnp.float32)

    out, log_det = inv_conv2d_forward(x, weight)
    out, log_det = jax.block_until_ready((out, log_det))

    # Cross-check against a plain-JAX reference of the 1x1 conv.
    ref = jnp.einsum("oc,nchw->nohw", weight[:, :, 0, 0], x)
    ref_logdet = jnp.broadcast_to(
        jnp.float32(H * W) * jnp.linalg.slogdet(weight[:, :, 0, 0])[1], (N,)
    )
    assert out.shape == (N, C, H, W)
    assert log_det.shape == (N,)
    assert jnp.allclose(out, ref, atol=1e-5, rtol=1e-5)
    assert jnp.allclose(log_det, ref_logdet, atol=1e-5, rtol=1e-5)

    print("KERNEL_OK")
</pallas_src>

<mosaic_0001>
module attributes {stable_mosaic.version = 11 : i64} {
  func.func @_invconv_kernel(%arg0: i32, %arg1: i32, %arg2: memref<4x4xf32, #tpu.memory_space<vmem>>, %arg3: memref<1x4x256xf32, #tpu.memory_space<vmem>>, %arg4: memref<1x4x256xf32, #tpu.memory_space<vmem>>) attributes {dimension_semantics = [#tpu.dimension_semantics<parallel>, #tpu.dimension_semantics<parallel>], iteration_bounds = array<i64: 2, 1>, scalar_prefetch = 0 : i64, scratch_operands = 0 : i64, tpu.core_type = #tpu.core_type<tc>, window_params = [{pipeline_mode = #tpu.pipeline_mode<synchronous>, transform_indices = @transform_0, window_bounds = array<i64: 4, 4>}, {transform_indices = @transform_1, window_bounds = array<i64: 1, 4, 256>}, {transform_indices = @transform_2, window_bounds = array<i64: 1, 4, 256>}]} {
    %c0 = arith.constant 0 : index
    %c0_0 = arith.constant 0 : index
    %0 = vector.load %arg2[%c0, %c0_0] : memref<4x4xf32, #tpu.memory_space<vmem>>, vector<4x4xf32>
    %c0_1 = arith.constant 0 : index
    %c0_2 = arith.constant 0 : index
    %c0_3 = arith.constant 0 : index
    %1 = vector.load %arg3[%c0_1, %c0_2, %c0_3] : memref<1x4x256xf32, #tpu.memory_space<vmem>>, vector<1x4x256xf32>
    "tpu.trace_start"() <{level = 10 : i32, message = "oc,nct->not"}> : () -> ()
    %cst = arith.constant dense<0.000000e+00> : vector<1x256x4xf32>
    %2 = tpu.matmul %1, %0, %cst {dimension_numbers = #tpu.dot_dimension_numbers<[1], [1], [0, 2], [0], [0, 0, 0, 2, 1, 0], [], []>} : vector<1x4x256xf32>, vector<4x4xf32>, vector<1x256x4xf32> -> vector<1x256x4xf32>
    %3 = tpu.transpose %2, [0, 2, 1] : vector<1x256x4xf32> -> vector<1x4x256xf32>
    "tpu.trace_stop"() : () -> ()
    %c0_4 = arith.constant 0 : index
    %c0_5 = arith.constant 0 : index
    %c0_6 = arith.constant 0 : index
    %4 = vector.load %arg4[%c0_4, %c0_5, %c0_6] : memref<1x4x256xf32, #tpu.memory_space<vmem>>, vector<1x4x256xf32>
    tpu.vector_store %arg4[%c0_4, %c0_5, %c0_6], %3 {strides = array<i32>} : memref<1x4x256xf32, #tpu.memory_space<vmem>>, vector<1x4x256xf32>,
    return
  }
  func.func @transform_0(%arg0: i32, %arg1: i32) -> (i32, i32) {
    %c0_i32 = arith.constant 0 : i32
    %c0_i32_0 = arith.constant 0 : i32
    %c0_i32_1 = arith.constant 0 : i32
    return %c0_i32, %c0_i32_0 : i32, i32
  }
  func.func @transform_1(%arg0: i32, %arg1: i32) -> (i32, i32, i32) {
    %c0_i32 = arith.constant 0 : i32
    %c0_i32_0 = arith.constant 0 : i32
    return %arg0, %c0_i32, %arg1 : i32, i32, i32
  }
  func.func @transform_2(%arg0: i32, %arg1: i32) -> (i32, i32, i32) {
    %c0_i32 = arith.constant 0 : i32
    %c0_i32_0 = arith.constant 0 : i32
    return %arg0, %c0_i32, %arg1 : i32, i32, i32
  }
}

</mosaic_0001>

<llo_original>
// kernel: custom-call.2
$region0: #{custom-call.2}
  %s0 = inlined_call_operand.vmem [shape: f32[4,4], index: 0, kind: input, shape index: {}]
  %s1 = inlined_call_operand.vmem [shape: f32[4,4], index: 1, kind: output, shape index: {0}]
  %s2 = inlined_call_operand.hbm [shape: s32[4], index: 2, kind: output, shape index: {1}]
  %s3 = inlined_call_operand.hbm [shape: s32[4], index: 3, kind: output, shape index: {2}]
  %4 = xla_tuple %s1, %s2, %s3
  $region1: #{custom-call.2} parent=0
    #allocation0 [shape = 'u8[4096]{0}', space=vmem, size = 0x1000, scoped, tag = 'operand span for operand 0']
    #allocation1 [shape = 'u8[2048]{0}', space=vmem, size = 0x800, scoped, tag = 'packed  for operand 0']
    #allocation2 [shape = 'u8[4096]{0}', space=vmem, size = 0x1000, scoped, tag = 'operand span for operand 1']
    #allocation3 [shape = 'u8[2048]{0}', space=vmem, size = 0x800, scoped, tag = 'packed  for operand 1']
    #allocation4 [shape = 'u8[4096]{0}', space=vmem, size = 0x1000, scoped, tag = 'operand span for operand 2']
    #allocation5 [shape = 'u8[512]{0}', space=vmem, size = 0x400, scoped, tag = 'packed  for operand 2']
    #allocation6 [shape = 's32[1]{0}', space=sflag, size = 0x4, scoped, tag = 'scoped memory for custom-call.2']
    #allocation7 [shape = 'u8[4096]{0}', space=vmem, size = 0x1000, scoped, tag = 'operand span for operand 3']
    #allocation8 [shape = 'u8[512]{0}', space=vmem, size = 0x400, scoped, tag = 'packed  for operand 3']
    #allocation9 [shape = 's32[1]{0}', space=sflag, size = 0x4, scoped, tag = 'scoped memory for custom-call.2']
    #allocation10 [shape = 's32[4,128]{1,0}', space=vmem, size = 0x1000, scoped, tag = 'scratch for permutations']
    %5 = vsyncpa [#allocation6], 0
    %6 = vsyncpa [#allocation9], 0
    // Predicated region
    $region2: #{custom-call.2} parent=1 // pred_check
      _
    $region3: #{custom-call.2} parent=1 // pred_check_branch
      %8 = sbr.rel (0) target = $region5
    $region4: #{custom-call.2} parent=1 // pred_region
      %p10 = scmp.gt.s32.totalorder 0, 0
      // Predicated region
      $region6: #{custom-call.2} parent=4 // pred_check
        %p11 = pneg %p10
      $region7: #{custom-call.2} parent=4 // pred_check_branch
        %13 = sbr.rel (%p11) target = $region9
      $region8: #{custom-call.2} parent=4 // pred_region
        %s14 = ssub.s32 0, 1
        %s15 = smul.u32 %s14, 8
        %s16 = scalar_lea.vmem %s0, %s15
        %v17 = vld [vmem:[%s0] sm:$0xff]
        // While loop
        $region10: #{custom-call.2} parent=8 // loop_pre_header
          _
        $region11: #{custom-call.2} parent=8 // loop_header
          %s18 = sphi %s0, %s40
          %s19 = sphi [#allocation1], %s41
          %v20 = vphi %v17, %v42
          %s21 = ssub.s32 %s16, 64
          %p22 = scmp.gt.s32.totalorder %s18, %s21
        $region12: #{custom-call.2} parent=8 // loop_header_branch
          %24 = sbr.rel (%p22) target = $region16
        $region13: #{custom-call.2} parent=8 // loop_body
          %25 = vst [vmem:[%s19] sm:$0xff] %v20
          %v26 = vld [vmem:[%s18 + $0x8] sm:$0xff]
          %27 = vst [vmem:[%s19 + $0x8] sm:$0xff] %v26
          %v28 = vld [vmem:[%s18 + $0x10] sm:$0xff]
          %29 = vst [vmem:[%s19 + $0x10] sm:$0xff] %v28
          %v30 = vld [vmem:[%s18 + $0x18] sm:$0xff]
          %31 = vst [vmem:[%s19 + $0x18] sm:$0xff] %v30
          %v32 = vld [vmem:[%s18 + $0x20] sm:$0xff]
          %33 = vst [vmem:[%s19 + $0x20] sm:$0xff] %v32
          %v34 = vld [vmem:[%s18 + $0x28] sm:$0xff]
          %35 = vst [vmem:[%s19 + $0x28] sm:$0xff] %v34
          %v36 = vld [vmem:[%s18 + $0x30] sm:$0xff]
          %37 = vst [vmem:[%s19 + $0x30] sm:$0xff] %v36
          %v38 = vld [vmem:[%s18 + $0x38] sm:$0xff]
          %39 = vst [vmem:[%s19 + $0x38] sm:$0xff] %v38
        $region14: #{custom-call.2} parent=8 // loop_footer
          %s40 = scalar_lea.vmem %s18, 64
          %s41 = scalar_lea.vmem %s19, 64
          %v42 = vld [vmem:[%s18 + $0x40] sm:$0xff]
        $region15: #{custom-call.2} parent=8 // loop_footer_branch
          %43 = sbr.rel target = $region11
        $region16: #{custom-call.2} parent=8 // loop_exit
          _
        // While loop
        $region17: #{custom-call.2} parent=8 // loop_pre_header
          _
        $region18: #{custom-call.2} parent=8 // loop_header
          %s44 = sphi %s18, %s52
          %s45 = sphi %s19, %s53
          %v46 = vphi %v20, %v46
          %p47 = scmp.gt.s32.totalorder %s44, %s16
        $region19: #{custom-call.2} parent=8 // loop_header_branch
          %49 = sbr.rel (%p47) target = $region23
        $region20: #{custom-call.2} parent=8 // loop_body
          %v50 = vld [vmem:[%s44] sm:$0xff]
          %51 = vst [vmem:[%s45] sm:$0xff] %v50
        $region21: #{custom-call.2} parent=8 // loop_footer
          %s52 = scalar_lea.vmem %s44, 8
          %s53 = scalar_lea.vmem %s45, 8
        $region22: #{custom-call.2} parent=8 // loop_footer_branch
          %54 = sbr.rel target = $region18
        $region23: #{custom-call.2} parent=8 // loop_exit
          _
      $region9: #{custom-call.2} parent=4 // pred_fallthru
        _
      %s56 = ssub.s32 16, 1
      %s57 = smul.u32 0, 8
      %s58 = scalar_lea.vmem [#allocation1], %s57
      %s59 = smul.u32 0, 8
      %s60 = scalar_lea.vmem %s0, %s59
      %v61 = vld [vmem:[%s60] sm:%s56]
      %62 = vst [vmem:[%s58] sm:%s56] %v61
    $region5: #{custom-call.2} parent=1 // pred_fallthru
      _
    %s64 = ssub.s32 16, 1
    %v65 = vld [vmem:[#allocation1] sm:%s64]
    %66 = vst [vmem:[#allocation0] sm:%s64] %v65
    %v67 = vld [vmem:[#allocation0] sm:$0xff]
    %68 = vst [vmem:[#allocation2] sm:$0xff] %v67
    %69 = vst [vmem:[#allocation4] sm:$0x1] 0
    %v70 = vlaneseq
    %v71 = vshrl.u32 %v70, 7
    %v72 = vmov %v71
    %74 = vst [vmem:[#allocation10] sm:$0xff] %v72
    loop: start=0, step=1, limit=4
    $region25: #{custom-call.2} parent=1 // loop_pre_header
      _
    $region26: #{custom-call.2} parent=1 // loop_header
      %s76 = sphi 0, %s80
      %p77 = scmp.ge.s32.totalorder %s76, 4
    $region27: #{custom-call.2} parent=1 // loop_header_branch
      %79 = sbr.rel (%p77) target = $region31
    $region28: #{custom-call.2} parent=1 // loop_body
      %v81 = vstv %s76
      %v82 = vlaneseq
      %v83 = vshrl.u32 %v82, 7
      %v84 = vmov %v83
      %v85 = vld [vmem:[#allocation2] sm:$0xff]
      %v86 = vand.u32 2147483647, %v85
      %v88 = vstv %s76
      %vm89 = vcmp.ge.s32.totalorder %v84, %v88
      %vm90 = vcmp.lt.s32.totalorder %v84, 4
      %vm91 = vmand %vm89, %vm90
      %vm92 = vcmp.lt.f32.partialorder -inf, %v86
      %vm93 = vmand %vm91, %vm92
      %v94 = vsel %vm93, %v84, %v81
      %v95 = vsel %vm93, %v86, -inf
      %v96 = vrot.slane %v95, 1
      %v97 = vrot.slane %v94, 1
      %vm98 = vcmp.ge.f32.partialorder %v96, %v95
      %v99 = vsel %vm98, %v96, %v95
      %v100 = vsel %vm98, %v97, %v94
      %v101 = vrot.slane %v96, 1
      %v102 = vrot.slane %v97, 1
      %vm103 = vcmp.ge.f32.partialorder %v101, %v99
      %v104 = vsel %vm103, %v101, %v99
      %v105 = vsel %vm103, %v102, %v100
      %v106 = vrot.slane %v101, 1
      %v107 = vrot.slane %v102, 1
      %vm108 = vcmp.ge.f32.partialorder %v106, %v104
      %v109 = vsel %vm108, %v106, %v104
      %v110 = vsel %vm108, %v107, %v105
      %v111 = vrot.slane %v106, 1
      %v112 = vrot.slane %v107, 1
      %vm113 = vcmp.ge.f32.partialorder %v111, %v109
      %v114 = vsel %vm113, %v111, %v109
      %v115 = vsel %vm113, %v112, %v110
      %v116 = vrot.slane %v111, 1
      %v117 = vrot.slane %v112, 1
      %vm118 = vcmp.ge.f32.partialorder %v116, %v114
      %v119 = vsel %vm118, %v116, %v114
      %v120 = vsel %vm118, %v117, %v115
      %v121 = vrot.slane %v116, 1
      %v122 = vrot.slane %v117, 1
      %vm123 = vcmp.ge.f32.partialorder %v121, %v119
      %v124 = vsel %vm123, %v121, %v119
      %v125 = vsel %vm123, %v122, %v120
      %v126 = vrot.slane %v121, 1
      %v127 = vrot.slane %v122, 1
      %vm128 = vcmp.ge.f32.partialorder %v126, %v124
      %v129 = vsel %vm128, %v126, %v124
      %v130 = vsel %vm128, %v127, %v125
      %s131 = ssub.s32 128, %s76
      %132 = vrot.lane.b32.xlu0 %v130, %s131
      %v133 = vpop.permute.xlu0 %132
      %s134 = vtos %v133
      %v135 = vstv %s76
      %v136 = vlaneseq
      %v137 = vand.u32 %v136, 127
      %vm138 = vcmp.eq.s32.totalorder %v137, %v135
      %v139 = vstv %s134
      %v140 = vld [vmem:[#allocation4] ss:$0 sm:$0xff]
      %v141 = vsel %vm138, %v139, %v140
      %142 = vst [vmem:[#allocation4] sm:$0x1] %v141
      %s143 = scalar_lea.vmem [#allocation2], %s76
      %s144 = scalar_lea.vmem [#allocation2], %s134
      %v145 = vld [vmem:[%s143] ss:$0 sm:$0xff]
      %v146 = vld [vmem:[%s144] ss:$0 sm:$0xff]
      %147 = vst [vmem:[%s144] sm:$0x1] %v145
      %148 = vst [vmem:[%s143] sm:$0x1] %v146
      %s149 = scalar_lea.vmem [#allocation10], %s76
      %s150 = scalar_lea.vmem [#allocation10], %s134
      %v151 = vld [vmem:[%s149] ss:$0 sm:$0xff]
      %v152 = vld [vmem:[%s150] ss:$0 sm:$0xff]
      %153 = vst [vmem:[%s150] sm:$0x1] %v151
      %154 = vst [vmem:[%s149] sm:$0x1] %v152
      %vm155 = vcmp.ne.f32.partialorder %v146, 0.0
      %vm156 = vmand %vm138, %vm155
      %v157 = vsel %vm156, %v146, 1.0
      %v158 = vlaneseq
      %v159 = vand.u32 %v158, 127
      %v160 = vstv %s76
      %vm161 = vcmp.gt.s32.totalorder %v159, %v160
      %v162 = vsel %vm161, %v146, 0.0
      %v163 = vlaneseq
      %v164 = vshrl.u32 %v163, 7
      %v165 = vmov %v164
      %v166 = vld [vmem:[#allocation2] sm:$0xff]
      %v168 = vstv %s76
      %vm169 = vcmp.gt.s32.totalorder %v165, %v168
      %v170 = vsel %vm169, %v157, 1.0
      %v171 = vrcp.pop %v170
      %v172 = vmul.f32 %v170, %v171
      %v173 = vsub.f32 1.0, %v172
      %v174 = vmul.f32 %v171, %v173
      %v175 = vadd.f32 %v171, %v174
      %vm176 = vweird.f32 %v170
      %vm177 = vweird.f32 %v171
      %vm178 = vmor %vm176, %vm177
      %v179 = vsel %vm178, %v171, %v175
      %v180 = vand.u32 2147483647, %v170
      %vm181 = vcmp.eq.f32.partialorder %v180, 8.507059e+37
      %v182 = vand.u32 %v170, 2147483648
      %v183 = vor.u32 1.1754944e-38, %v182
      %v184 = vsel %vm181, %v183, %v179
      %v185 = vmul.f32 %v166, %v184
      %vm186 = vmand %vm169, %vm138
      %v187 = vsel %vm186, %v185, 0.0
      %188 = vadd.xlane.f32.xlu0 %v187
      %v189 = vpop.xlane.xlu0 %188
      %v190 = vmul.f32 %v189, %v162
      %v191 = vsub.f32 %v185, %v190
      %192 = vst [vmem:[#allocation2] sm:$0xff] %v191
    $region29: #{custom-call.2} parent=1 // loop_footer
      %s80 = sadd.s32 1, %s76
    $region30: #{custom-call.2} parent=1 // loop_footer_branch
      %75 = sbr.rel target = $region26
    $region31: #{custom-call.2} parent=1 // loop_exit
      _
    %v193 = vld [vmem:[#allocation10] sm:$0xff]
    %s194 = scalar_lea.vmem [#allocation10], 8
    %s195 = scalar_lea.vmem [#allocation10], 16
    %s196 = scalar_lea.vmem [#allocation10], 24
    %s197 = scalar_lea.vmem [#allocation10], 32
    %s198 = scalar_lea.vmem [#allocation10], 40
    %s199 = scalar_lea.vmem [#allocation10], 48
    %s200 = scalar_lea.vmem [#allocation10], 56
    %s201 = scalar_lea.vmem [#allocation10], 64
    %s202 = scalar_lea.vmem [#allocation10], 72
    %s203 = scalar_lea.vmem [#allocation10], 80
    %s204 = scalar_lea.vmem [#allocation10], 88
    %s205 = scalar_lea.vmem [#allocation10], 96
    %s206 = scalar_lea.vmem [#allocation10], 104
    %s207 = scalar_lea.vmem [#allocation10], 112
    %s208 = scalar_lea.vmem [#allocation10], 120
    %209 = vxpose.xlu0.b32.start [1/16] %v193, 128
    %210 = vxpose.xlu0.b32.cont [2/16] 0, 128
    %211 = vxpose.xlu0.b32.cont [3/16] 0, 128
    %212 = vxpose.xlu0.b32.cont [4/16] 0, 128
    %213 = vxpose.xlu0.b32.cont [5/16] 0, 128
    %214 = vxpose.xlu0.b32.cont [6/16] 0, 128
    %215 = vxpose.xlu0.b32.cont [7/16] 0, 128
    %216 = vxpose.xlu0.b32.cont [8/16] 0, 128
    %217 = vxpose.xlu0.b32.cont [9/16] 0, 128
    %218 = vxpose.xlu0.b32.cont [10/16] 0, 128
    %219 = vxpose.xlu0.b32.cont [11/16] 0, 128
    %220 = vxpose.xlu0.b32.cont [12/16] 0, 128
    %221 = vxpose.xlu0.b32.cont [13/16] 0, 128
    %222 = vxpose.xlu0.b32.cont [14/16] 0, 128
    %223 = vxpose.xlu0.b32.cont [15/16] 0, 128
    %224 = vxpose.xlu0.b32.end [16/16] 0, 128
    %v225 = vpop.trf.xlu0
    %v226 = vpop.trf.xlu0
    %v227 = vpop.trf.xlu0
    %v228 = vpop.trf.xlu0
    %v229 = vpop.trf.xlu0
    %v230 = vpop.trf.xlu0
    %v231 = vpop.trf.xlu0
    %v232 = vpop.trf.xlu0
    %v233 = vpop.trf.xlu0
    %v234 = vpop.trf.xlu0
    %v235 = vpop.trf.xlu0
    %v236 = vpop.trf.xlu0
    %v237 = vpop.trf.xlu0
    %v238 = vpop.trf.xlu0
    %v239 = vpop.trf.xlu0
    %v240 = vpop.trf.xlu0
    %241 = vst [vmem:[#allocation7] sm:$0x1] %v225
    %s243 = ssub.s32 16, 1
    %v244 = vld [vmem:[#allocation2] sm:%s243]
    %s246 = ssub.s32 16, 1
    %247 = vst [vmem:[#allocation3] sm:%s246] %v244
    %s249 = ssub.s32 2, 1
    %v250 = vld [vmem:[#allocation4] sm:%s249]
    %s252 = ssub.s32 2, 1
    %253 = vst [vmem:[#allocation5] sm:%s252] %v250
    %s255 = ssub.s32 2, 1
    %v256 = vld [vmem:[#allocation7] sm:%s255]
    %s258 = ssub.s32 2, 1
    %259 = vst [vmem:[#allocation8] sm:%s258] %v256
    // Predicated region
    $region32: #{custom-call.2} parent=1 // pred_check
      _
    $region33: #{custom-call.2} parent=1 // pred_check_branch
      %261 = sbr.rel (0) target = $region35
    $region34: #{custom-call.2} parent=1 // pred_region
      %p263 = scmp.gt.s32.totalorder 0, 0
      // Predicated region
      $region36: #{custom-call.2} parent=34 // pred_check
        %p264 = pneg %p263
      $region37: #{custom-call.2} parent=34 // pred_check_branch
        %266 = sbr.rel (%p264) target = $region39
      $region38: #{custom-call.2} parent=34 // pred_region
        %s267 = ssub.s32 0, 1
        %s268 = smul.u32 %s267, 8
        %s269 = scalar_lea.vmem [#allocation3], %s268
        %v270 = vld [vmem:[#allocation3] sm:$0xff]
        // While loop
        $region40: #{custom-call.2} parent=38 // loop_pre_header
          _
        $region41: #{custom-call.2} parent=38 // loop_header
          %s271 = sphi [#allocation3], %s293
          %s272 = sphi %s1, %s294
          %v273 = vphi %v270, %v295
          %s274 = ssub.s32 %s269, 64
          %p275 = scmp.gt.s32.totalorder %s271, %s274
        $region42: #{custom-call.2} parent=38 // loop_header_branch
          %277 = sbr.rel (%p275) target = $region46
        $region43: #{custom-call.2} parent=38 // loop_body
          %278 = vst [vmem:[%s272] sm:$0xff] %v273
          %v279 = vld [vmem:[%s271 + $0x8] sm:$0xff]
          %280 = vst [vmem:[%s272 + $0x8] sm:$0xff] %v279
          %v281 = vld [vmem:[%s271 + $0x10] sm:$0xff]
          %282 = vst [vmem:[%s272 + $0x10] sm:$0xff] %v281
          %v283 = vld [vmem:[%s271 + $0x18] sm:$0xff]
          %284 = vst [vmem:[%s272 + $0x18] sm:$0xff] %v283
          %v285 = vld [vmem:[%s271 + $0x20] sm:$0xff]
          %286 = vst [vmem:[%s272 + $0x20] sm:$0xff] %v285
          %v287 = vld [vmem:[%s271 + $0x28] sm:$0xff]
          %288 = vst [vmem:[%s272 + $0x28] sm:$0xff] %v287
          %v289 = vld [vmem:[%s271 + $0x30] sm:$0xff]
          %290 = vst [vmem:[%s272 + $0x30] sm:$0xff] %v289
          %v291 = vld [vmem:[%s271 + $0x38] sm:$0xff]
          %292 = vst [vmem:[%s272 + $0x38] sm:$0xff] %v291
        $region44: #{custom-call.2} parent=38 // loop_footer
          %s293 = scalar_lea.vmem %s271, 64
          %s294 = scalar_lea.vmem %s272, 64
          %v295 = vld [vmem:[%s271 + $0x40] sm:$0xff]
        $region45: #{custom-call.2} parent=38 // loop_footer_branch
          %296 = sbr.rel target = $region41
        $region46: #{custom-call.2} parent=38 // loop_exit
          _
        // While loop
        $region47: #{custom-call.2} parent=38 // loop_pre_header
          _
        $region48: #{custom-call.2} parent=38 // loop_header
          %s297 = sphi %s271, %s305
          %s298 = sphi %s272, %s306
          %v299 = vphi %v273, %v299
          %p300 = scmp.gt.s32.totalorder %s297, %s269
        $region49: #{custom-call.2} parent=38 // loop_header_branch
          %302 = sbr.rel (%p300) target = $region53
        $region50: #{custom-call.2} parent=38 // loop_body
          %v303 = vld [vmem:[%s297] sm:$0xff]
          %304 = vst [vmem:[%s298] sm:$0xff] %v303
        $region51: #{custom-call.2} parent=38 // loop_footer
          %s305 = scalar_lea.vmem %s297, 8
          %s306 = scalar_lea.vmem %s298, 8
        $region52: #{custom-call.2} parent=38 // loop_footer_branch
          %307 = sbr.rel target = $region48
        $region53: #{custom-call.2} parent=38 // loop_exit
          _
      $region39: #{custom-call.2} parent=34 // pred_fallthru
        _
      %s309 = ssub.s32 16, 1
      %s310 = smul.u32 0, 8
      %s311 = scalar_lea.vmem %s1, %s310
      %s312 = smul.u32 0, 8
      %s313 = scalar_lea.vmem [#allocation3], %s312
      %v314 = vld [vmem:[%s313] sm:%s309]
      %315 = vst [vmem:[%s311] sm:%s309] %v314
    $region35: #{custom-call.2} parent=1 // pred_fallthru
      _
    // Predicated region
    $region54: #{custom-call.2} parent=1 // pred_check
      _
    $region55: #{custom-call.2} parent=1 // pred_check_branch
      %317 = sbr.rel (0) target = $region57
    $region56: #{custom-call.2} parent=1 // pred_region
      %319 = vsyncadd [#allocation6], 0
      %s321 = sshll.u32 [#allocation5], 4
      %s322 = int_to_ptr.vmem [resolvable:$true] %s321
      %s323 = sshll.u32 %s2, 4
      %s324 = int_to_ptr.hbm [resolvable:$true] %s323
      %326 = dma.vmem_to_hbm [thread:$0]  %s322, 16, %s324, [#allocation6]
    $region57: #{custom-call.2} parent=1 // pred_fallthru
      _
    // Predicated region
    $region58: #{custom-call.2} parent=1 // pred_check
      _
    $region59: #{custom-call.2} parent=1 // pred_check_branch
      %328 = sbr.rel (0) target = $region61
    $region60: #{custom-call.2} parent=1 // pred_region
      %330 = vsyncadd [#allocation9], 0
      %s332 = sshll.u32 [#allocation8], 4
      %s333 = int_to_ptr.vmem [resolvable:$true] %s332
      %s334 = sshll.u32 %s3, 4
      %s335 = int_to_ptr.hbm [resolvable:$true] %s334
      %337 = dma.vmem_to_hbm [thread:$0]  %s333, 16, %s335, [#allocation9]
    $region61: #{custom-call.2} parent=1 // pred_fallthru
      _
    // Predicated region
    $region62: #{custom-call.2} parent=1 // pred_check
      _
    $region63: #{custom-call.2} parent=1 // pred_check_branch
      %339 = sbr.rel (0) target = $region65
    $region64: #{custom-call.2} parent=1 // pred_region
      %341 = dma.done [#allocation6], 16
    $region65: #{custom-call.2} parent=1 // pred_fallthru
      _
    // Predicated region
    $region66: #{custom-call.2} parent=1 // pred_check
      _
    $region67: #{custom-call.2} parent=1 // pred_check_branch
      %343 = sbr.rel (0) target = $region69
    $region68: #{custom-call.2} parent=1 // pred_region
      %345 = dma.done [#allocation9], 16
    $region69: #{custom-call.2} parent=1 // pred_fallthru
      _
    %346 = vsyncpa [#allocation6], 1
    %347 = vsyncpa [#allocation9], 1

// kernel: inv_conv2d_forward.1
$region0: #{inv_conv2d_forward.1}
  #allocation0 [shape = 'u32[]', space=smem, size = 0x4, offset = 0x4, fixed_abs, tag = 'smem constant byte address 0x4 - core index']
  #allocation1 [shape = 'u32[72,128]{1,0:T(1,128)}', space=vmem, size = 0x9000, scoped, tag = 'internal scratch']
  %s0 = inlined_call_operand.vmem [shape: f32[4,4], index: 0, kind: input, shape index: {}]
  %s1 = inlined_call_operand.vmem [shape: f32[2,4,256], index: 1, kind: input, shape index: {}]
  %s2 = inlined_call_operand.vmem [shape: f32[2,4,256], index: 2, kind: output, shape index: {}]
  %s3 = sld [smem:[#allocation0]]
  $region41: #{inv_conv2d_forward.1} parent=0
    _
  %s5 = ssub.s32 1, %s3
  %s6 = scalar_select 0, %s5, %s3
  loop: start=0, step=1, limit=4
  $region2: #{inv_conv2d_forward.1} parent=0 // loop_pre_header
    _
  $region3: #{inv_conv2d_forward.1} parent=0 // loop_header
    %s8 = sphi 0, %s12
    %p9 = scmp.ge.s32.totalorder %s8, 4
    %s15 = sphi 0, %s27
    %s16 = sphi 0, %s23
    %s17 = sphi 0, %s15
    %s18 = sphi 0, %s16
    %s19 = sphi 0, %s17
    %s20 = sphi 0, %s18
    %s28 = sphi 0, %s28
    %s30 = sphi 0, %s28
    %s31 = sphi 0, %s30
    %s45 = sphi 0, %s31
    %s53 = sphi 0, %s55
    %s56 = sphi 0, %s53
    %s57 = sphi 0, %s56
    %s73 = sphi 0, %s57
    %s81 = sphi 0, %s83
    %s84 = sphi 0, %s81
    %s85 = sphi 0, %s84
    %s101 = sphi 0, %s85
  $region4: #{inv_conv2d_forward.1} parent=0 // loop_header_branch
    %11 = sbr.rel (%p9) target = $region8
  $region5: #{inv_conv2d_forward.1} parent=0 // loop_body
    %s13 = ssub.s32 %s8, 1
    %s14 = ssub.s32 %s8, 2
    %s21 = sadd.s32 1, %s16
    %p22 = scmp.ge.s32.totalorder %s21, 1
    %s23 = scalar_select %p22, 0, %s21
    %s24 = sadd.s32 1, %s15
    %s25 = scalar_select %p22, %s24, %s15
    %p26 = scmp.ge.s32.totalorder %s25, 2
    %s27 = scalar_select %p26, 0, %s25
    %s29 = sadd.s32 %s28, 1
    %p32 = scmp.eq.s32.totalorder %s8, 1
    %p33 = scmp.ne.s32.totalorder %s28, %s30
    %p34 = scmp.eq.s32.totalorder %s8, 0
    %p35 = por %p33, %p34
    %p36 = scmp.ne.s32.totalorder %s28, %s30
    %p37 = scmp.eq.s32.totalorder %s13, 1
    %p38 = por %p36, %p37
    %p39 = scmp.ne.s32.totalorder %s30, %s31
    %p40 = scmp.eq.s32.totalorder %s13, 0
    %p41 = por %p39, %p40
    %p42 = scmp.ne.s32.totalorder %s30, %s31
    %p43 = scmp.eq.s32.totalorder %s14, 1
    %p44 = por %p42, %p43
    %p46 = scmp.ne.s32.totalorder %s31, %s45
    %p47 = scmp.eq.s32.totalorder %s14, 0
    %p48 = por %p46, %p47
    %s49 = ssub.s32 %s15, %s27
    %s50 = ssub.s32 %s16, %s23
    %s51 = sor.u32 %s49, %s50
    %p52 = scmp.eq.s32.totalorder %s51, 0
    %s54 = sadd.s32 %s53, 1
    %s55 = scalar_select %p52, %s53, %s54
    %p58 = pneg %p52
    %p59 = scmp.eq.s32.totalorder %s8, 1
    %p60 = por %p58, %p59
    %p61 = scmp.ne.s32.totalorder %s53, %s56
    %p62 = scmp.eq.s32.totalorder %s8, 0
    %p63 = por %p61, %p62
    %p64 = scmp.ne.s32.totalorder %s53, %s56
    %p65 = scmp.eq.s32.totalorder %s13, 1
    %p66 = por %p64, %p65
    %p67 = scmp.ne.s32.totalorder %s56, %s57
    %p68 = scmp.eq.s32.totalorder %s13, 0
    %p69 = por %p67, %p68
    %p70 = scmp.ne.s32.totalorder %s56, %s57
    %p71 = scmp.eq.s32.totalorder %s14, 1
    %p72 = por %p70, %p71
    %p74 = scmp.ne.s32.totalorder %s57, %s73
    %p75 = scmp.eq.s32.totalorder %s14, 0
    %p76 = por %p74, %p75
    %s77 = ssub.s32 %s15, %s27
    %s78 = ssub.s32 %s16, %s23
    %s79 = sor.u32 %s77, %s78
    %p80 = scmp.eq.s32.totalorder %s79, 0
    %s82 = sadd.s32 %s81, 1
    %s83 = scalar_select %p80, %s81, %s82
    %p86 = pneg %p80
    %p87 = scmp.eq.s32.totalorder %s8, 1
    %p88 = por %p86, %p87
    %p89 = scmp.ne.s32.totalorder %s81, %s84
    %p90 = scmp.eq.s32.totalorder %s8, 0
    %p91 = por %p89, %p90
    %p92 = scmp.ne.s32.totalorder %s81, %s84
    %p93 = scmp.eq.s32.totalorder %s13, 1
    %p94 = por %p92, %p93
    %p95 = scmp.ne.s32.totalorder %s84, %s85
    %p96 = scmp.eq.s32.totalorder %s13, 0
    %p97 = por %p95, %p96
    %p98 = scmp.ne.s32.totalorder %s84, %s85
    %p99 = scmp.eq.s32.totalorder %s14, 1
    %p100 = por %p98, %p99
    %p102 = scmp.ne.s32.totalorder %s85, %s101
    %p103 = scmp.eq.s32.totalorder %s14, 0
    %p104 = por %p102, %p103
    %p105 = scmp.le.s32.totalorder 1, %s8
    %p106 = scmp.lt.s32.totalorder %s8, 3
    %p107 = pnand %p105, %p106
    %p108 = pneg %p107
    // Predicated region
    $region9: #{inv_conv2d_forward.1} parent=5 // pred_check
      _
    $region10: #{inv_conv2d_forward.1} parent=5 // pred_check_branch
      %110 = sbr.rel (%p107) target = $region12
    $region11: #{inv_conv2d_forward.1} parent=5 // pred_region
      %s111 = ssub.s32 %s8, 1
      // Predicated region
      $region13: #{inv_conv2d_forward.1} parent=11 // pred_check
        %p112 = pneg %p41
      $region14: #{inv_conv2d_forward.1} parent=11 // pred_check_branch
        %114 = sbr.rel (%p112) target = $region16
      $region15: #{inv_conv2d_forward.1} parent=11 // pred_region
        _
      $region16: #{inv_conv2d_forward.1} parent=11 // pred_fallthru
        _
    $region12: #{inv_conv2d_forward.1} parent=5 // pred_fallthru
      _
    %p115 = scmp.lt.s32.totalorder %s8, 2
    // Predicated region
    $region17: #{inv_conv2d_forward.1} parent=5 // pred_check
      %p116 = pneg %p115
    $region18: #{inv_conv2d_forward.1} parent=5 // pred_check_branch
      %118 = sbr.rel (%p116) target = $region20
    $region19: #{inv_conv2d_forward.1} parent=5 // pred_region
      // Predicated region
      $region21: #{inv_conv2d_forward.1} parent=19 // pred_check
        %p119 = pneg %p63
      $region22: #{inv_conv2d_forward.1} parent=19 // pred_check_branch
        %121 = sbr.rel (%p119) target = $region24
      $region23: #{inv_conv2d_forward.1} parent=19 // pred_region
        %s122 = smul.u32 2, %s16
        %p123 = scmp.lt.s32.totalorder %s15, 1
        %s124 = scalar_select %p123, %s15, 1
        %p125 = scmp.lt.s32.totalorder %s122, 1
        %s126 = scalar_select %p125, %s122, 1
        %s127 = smul.addr %s124, 2
        %s128 = sadd.s32 %s126, %s127
        %s129 = smul.addr %s128, 4
        %s130 = scalar_lea.vmem %s1, %s129
        %s131 = smul.u32 2, %s16
      $region24: #{inv_conv2d_forward.1} parent=19 // pred_fallthru
        _
    $region20: #{inv_conv2d_forward.1} parent=5 // pred_fallthru
      _
    %p132 = scmp.le.s32.totalorder 1, %s8
    %p133 = scmp.lt.s32.totalorder %s8, 3
    %p134 = pnand %p132, %p133
    %p135 = pneg %p134
    // Predicated region
    $region25: #{inv_conv2d_forward.1} parent=5 // pred_check
      _
    $region26: #{inv_conv2d_forward.1} parent=5 // pred_check_branch
      %137 = sbr.rel (%p134) target = $region28
    $region27: #{inv_conv2d_forward.1} parent=5 // pred_region
      %s138 = ssub.s32 %s8, 1
      %p139 = pneg %p41
      %p140 = pneg %p38
      %s141 = smul.u32 2, %s18
      %p142 = scmp.lt.s32.totalorder %s17, 1
      %s143 = scalar_select %p142, %s17, 1
      %p144 = scmp.lt.s32.totalorder %s141, 1
      %s145 = scalar_select %p144, %s141, 1
      %s146 = smul.addr %s143, 2
      %s147 = sadd.s32 %s145, %s146
      %s148 = smul.addr %s147, 4
      %s149 = scalar_lea.vmem %s1, %s148
      %p150 = pneg %p69
      %p151 = pneg %p66
      %p152 = pneg %p97
      %p153 = pneg %p94
      %s154 = smul.u32 2, %s18
      %p155 = scmp.lt.s32.totalorder %s17, 1
      %s156 = scalar_select %p155, %s17, 1
      %p157 = scmp.lt.s32.totalorder %s154, 1
      %s158 = scalar_select %p157, %s154, 1
      %s159 = smul.addr %s156, 2
      %s160 = sadd.s32 %s158, %s159
      %s161 = smul.addr %s160, 4
      %s162 = scalar_lea.vmem %s2, %s161
      %s163 = smul.u32 2, %s18
      %p164 = scmp.lt.s32.totalorder %s17, 1
      %s165 = scalar_select %p164, %s17, 1
      %p166 = scmp.lt.s32.totalorder %s163, 1
      %s167 = scalar_select %p166, %s163, 1
      %s168 = smul.addr %s165, 2
      %s169 = sadd.s32 %s167, %s168
      %s170 = smul.addr %s169, 4
      %s171 = scalar_lea.vmem %s1, %s170
      %s172 = smul.u32 2, %s18
      %s173 = smul.u32 2, %s18
      %p174 = scmp.lt.s32.totalorder %s17, 1
      %s175 = scalar_select %p174, %s17, 1
      %p176 = scmp.lt.s32.totalorder %s173, 1
      %s177 = scalar_select %p176, %s173, 1
      %s178 = smul.addr %s175, 2
      %s179 = sadd.s32 %s177, %s178
      %s180 = smul.addr %s179, 4
      %s181 = scalar_lea.vmem %s2, %s180
      %s182 = smul.u32 2, %s18
      %v183 = vld [vmem:[%s0] sm:$0xf]
      %v184 = vld [vmem:[%s171] sm:$0xff]
      %186 = vst [vmem:[#allocation1] ss:$2 sm:$0xff] %v184
      %v187 = vld.sshfl [vmem:[#allocation1] sm:$0xff pattern:$0x75316420]
      %v188 = vld.sshfl [vmem:[#allocation1 + $0x8] sm:$0xff pattern:$0x75316420]
      %191 = vxpose.xlu0.b32.start [1/16] %v187, 128
      %192 = vxpose.xlu0.b32.cont [2/16] 0.0, 128
      %193 = vxpose.xlu0.b32.cont [3/16] 0.0, 128
      %194 = vxpose.xlu0.b32.cont [4/16] 0.0, 128
      %195 = vxpose.xlu0.b32.cont [5/16] 0.0, 128
      %196 = vxpose.xlu0.b32.cont [6/16] 0.0, 128
      %197 = vxpose.xlu0.b32.cont [7/16] 0.0, 128
      %198 = vxpose.xlu0.b32.cont [8/16] 0.0, 128
      %199 = vxpose.xlu0.b32.cont [9/16] 0.0, 128
      %200 = vxpose.xlu0.b32.cont [10/16] 0.0, 128
      %201 = vxpose.xlu0.b32.cont [11/16] 0.0, 128
      %202 = vxpose.xlu0.b32.cont [12/16] 0.0, 128
      %203 = vxpose.xlu0.b32.cont [13/16] 0.0, 128
      %204 = vxpose.xlu0.b32.cont [14/16] 0.0, 128
      %205 = vxpose.xlu0.b32.cont [15/16] 0.0, 128
      %206 = vxpose.xlu0.b32.end [16/16] 0.0, 128
      %v207 = vpop.trf.xlu0
      %v208 = vpop.trf.xlu0
      %v209 = vpop.trf.xlu0
      %v210 = vpop.trf.xlu0
      %v211 = vpop.trf.xlu0
      %v212 = vpop.trf.xlu0
      %v213 = vpop.trf.xlu0
      %v214 = vpop.trf.xlu0
      %v215 = vpop.trf.xlu0
      %v216 = vpop.trf.xlu0
      %v217 = vpop.trf.xlu0
      %v218 = vpop.trf.xlu0
      %v219 = vpop.trf.xlu0
      %v220 = vpop.trf.xlu0
      %v221 = vpop.trf.xlu0
      %v222 = vpop.trf.xlu0
      %223 = vxpose.xlu0.b32.start [1/16] %v188, 128
      %224 = vxpose.xlu0.b32.cont [2/16] 0.0, 128
      %225 = vxpose.xlu0.b32.cont [3/16] 0.0, 128
      %226 = vxpose.xlu0.b32.cont [4/16] 0.0, 128
      %227 = vxpose.xlu0.b32.cont [5/16] 0.0, 128
      %228 = vxpose.xlu0.b32.cont [6/16] 0.0, 128
      %229 = vxpose.xlu0.b32.cont [7/16] 0.0, 128
      %230 = vxpose.xlu0.b32.cont [8/16] 0.0, 128
      %231 = vxpose.xlu0.b32.cont [9/16] 0.0, 128
      %232 = vxpose.xlu0.b32.cont [10/16] 0.0, 128
      %233 = vxpose.xlu0.b32.cont [11/16] 0.0, 128
      %234 = vxpose.xlu0.b32.cont [12/16] 0.0, 128
      %235 = vxpose.xlu0.b32.cont [13/16] 0.0, 128
      %236 = vxpose.xlu0.b32.cont [14/16] 0.0, 128
      %237 = vxpose.xlu0.b32.cont [15/16] 0.0, 128
      %238 = vxpose.xlu0.b32.end [16/16] 0.0, 128
      %v239 = vpop.trf.xlu0
      %v240 = vpop.trf.xlu0
      %v241 = vpop.trf.xlu0
      %v242 = vpop.trf.xlu0
      %v243 = vpop.trf.xlu0
      %v244 = vpop.trf.xlu0
      %v245 = vpop.trf.xlu0
      %v246 = vpop.trf.xlu0
      %v247 = vpop.trf.xlu0
      %v248 = vpop.trf.xlu0
      %v249 = vpop.trf.xlu0
      %v250 = vpop.trf.xlu0
      %v251 = vpop.trf.xlu0
      %v252 = vpop.trf.xlu0
      %v253 = vpop.trf.xlu0
      %v254 = vpop.trf.xlu0
      %vm255 = vcmask 31744
      %v257 = vsel %vm255, %v207, 0
      %v260 = vsel %vm255, %v208, 0
      %v263 = vsel %vm255, %v209, 0
      %v266 = vsel %vm255, %v210, 0
      %v269 = vsel %vm255, %v211, 0
      %v272 = vsel %vm255, %v212, 0
      %v275 = vsel %vm255, %v213, 0
      %v278 = vsel %vm255, %v214, 0
      %v281 = vsel %vm255, %v215, 0
      %v284 = vsel %vm255, %v216, 0
      %v287 = vsel %vm255, %v217, 0
      %v290 = vsel %vm255, %v218, 0
      %v293 = vsel %vm255, %v219, 0
      %v296 = vsel %vm255, %v220, 0
      %v299 = vsel %vm255, %v221, 0
      %v302 = vsel %vm255, %v222, 0
      %v305 = vsel %vm255, %v239, 0
      %v308 = vsel %vm255, %v240, 0
      %v311 = vsel %vm255, %v241, 0
      %v314 = vsel %vm255, %v242, 0
      %v317 = vsel %vm255, %v243, 0
      %v320 = vsel %vm255, %v244, 0
      %v323 = vsel %vm255, %v245, 0
      %v326 = vsel %vm255, %v246, 0
      %v329 = vsel %vm255, %v247, 0
      %v332 = vsel %vm255, %v248, 0
      %v335 = vsel %vm255, %v249, 0
      %v338 = vsel %vm255, %v250, 0
      %v341 = vsel %vm255, %v251, 0
      %v344 = vsel %vm255, %v252, 0
      %v347 = vsel %vm255, %v253, 0
      %v350 = vsel %vm255, %v254, 0
      %v353 = vsel %vm255, %v183, 0
      %355 = vmatpush.xpose.msra.mxu0 0.0
      %356 = vmatpush.xpose.msra.mxu0 0.0
      %357 = vmatpush.xpose.msra.mxu0 0.0
      %358 = vmatpush.xpose.msra.mxu0 0.0
      %359 = vmatpush.xpose.msra.mxu0 0.0
      %360 = vmatpush.xpose.msra.mxu0 0.0
      %361 = vmatpush.xpose.msra.mxu0 0.0
      %362 = vmatpush.xpose.msra.mxu0 0.0
      %363 = vmatpush.xpose.msra.mxu0 0.0
      %364 = vmatpush.xpose.msra.mxu0 0.0
      %365 = vmatpush.xpose.msra.mxu0 0.0
      %366 = vmatpush.xpose.msra.mxu0 0.0
      %367 = vmatpush.xpose.msra.mxu0 0.0
      %368 = vmatpush.xpose.msra.mxu0 0.0
      %369 = vmatpush.xpose.msra.mxu0 0.0
      %370 = vmatpush.xpose.msra.mxu0 %v353
      %371 = vmatmul.f32.gmra.mxu0 %v257
      %v372 = vpop.f32.mrf.mxu0
      %v373 = vadd.f32 0.0, %v372
      %374 = vmatmul.f32.gmra.mxu0 %v260
      %v375 = vpop.f32.mrf.mxu0
      %v376 = vadd.f32 0.0, %v375
      %377 = vmatmul.f32.gmra.mxu0 %v263
      %v378 = vpop.f32.mrf.mxu0
      %v379 = vadd.f32 0.0, %v378
      %380 = vmatmul.f32.gmra.mxu0 %v266
      %v381 = vpop.f32.mrf.mxu0
      %v382 = vadd.f32 0.0, %v381
      %383 = vmatmul.f32.gmra.mxu0 %v269
      %v384 = vpop.f32.mrf.mxu0
      %v385 = vadd.f32 0.0, %v384
      %386 = vmatmul.f32.gmra.mxu0 %v272
      %v387 = vpop.f32.mrf.mxu0
      %v388 = vadd.f32 0.0, %v387
      %389 = vmatmul.f32.gmra.mxu0 %v275
      %v390 = vpop.f32.mrf.mxu0
      %v391 = vadd.f32 0.0, %v390
      %392 = vmatmul.f32.gmra.mxu0 %v278
      %v393 = vpop.f32.mrf.mxu0
      %v394 = vadd.f32 0.0, %v393
      %395 = vmatmul.f32.gmra.mxu0 %v281
      %v396 = vpop.f32.mrf.mxu0
      %v397 = vadd.f32 0.0, %v396
      %398 = vmatmul.f32.gmra.mxu0 %v284
      %v399 = vpop.f32.mrf.mxu0
      %v400 = vadd.f32 0.0, %v399
      %401 = vmatmul.f32.gmra.mxu0 %v287
      %v402 = vpop.f32.mrf.mxu0
      %v403 = vadd.f32 0.0, %v402
      %404 = vmatmul.f32.gmra.mxu0 %v290
      %v405 = vpop.f32.mrf.mxu0
      %v406 = vadd.f32 0.0, %v405
      %407 = vmatmul.f32.gmra.mxu0 %v293
      %v408 = vpop.f32.mrf.mxu0
      %v409 = vadd.f32 0.0, %v408
      %410 = vmatmul.f32.gmra.mxu0 %v296
      %v411 = vpop.f32.mrf.mxu0
      %v412 = vadd.f32 0.0, %v411
      %413 = vmatmul.f32.gmra.mxu0 %v299
      %v414 = vpop.f32.mrf.mxu0
      %v415 = vadd.f32 0.0, %v414
      %416 = vmatmul.f32.gmra.mxu0 %v302
      %v417 = vpop.f32.mrf.mxu0
      %v418 = vadd.f32 0.0, %v417
      %419 = vmatmul.f32.gmra.mxu0 %v305
      %v420 = vpop.f32.mrf.mxu0
      %v421 = vadd.f32 0.0, %v420
      %422 = vmatmul.f32.gmra.mxu0 %v308
      %v423 = vpop.f32.mrf.mxu0
      %v424 = vadd.f32 0.0, %v423
      %425 = vmatmul.f32.gmra.mxu0 %v311
      %v426 = vpop.f32.mrf.mxu0
      %v427 = vadd.f32 0.0, %v426
      %428 = vmatmul.f32.gmra.mxu0 %v314
      %v429 = vpop.f32.mrf.mxu0
      %v430 = vadd.f32 0.0, %v429
      %431 = vmatmul.f32.gmra.mxu0 %v317
      %v432 = vpop.f32.mrf.mxu0
      %v433 = vadd.f32 0.0, %v432
      %434 = vmatmul.f32.gmra.mxu0 %v320
      %v435 = vpop.f32.mrf.mxu0
      %v436 = vadd.f32 0.0, %v435
      %437 = vmatmul.f32.gmra.mxu0 %v323
      %v438 = vpop.f32.mrf.mxu0
      %v439 = vadd.f32 0.0, %v438
      %440 = vmatmul.f32.gmra.mxu0 %v326
      %v441 = vpop.f32.mrf.mxu0
      %v442 = vadd.f32 0.0, %v441
      %443 = vmatmul.f32.gmra.mxu0 %v329
      %v444 = vpop.f32.mrf.mxu0
      %v445 = vadd.f32 0.0, %v444
      %446 = vmatmul.f32.gmra.mxu0 %v332
      %v447 = vpop.f32.mrf.mxu0
      %v448 = vadd.f32 0.0, %v447
      %449 = vmatmul.f32.gmra.mxu0 %v335
      %v450 = vpop.f32.mrf.mxu0
      %v451 = vadd.f32 0.0, %v450
      %452 = vmatmul.f32.gmra.mxu0 %v338
      %v453 = vpop.f32.mrf.mxu0
      %v454 = vadd.f32 0.0, %v453
      %455 = vmatmul.f32.gmra.mxu0 %v341
      %v456 = vpop.f32.mrf.mxu0
      %v457 = vadd.f32 0.0, %v456
      %458 = vmatmul.f32.gmra.mxu0 %v344
      %v459 = vpop.f32.mrf.mxu0
      %v460 = vadd.f32 0.0, %v459
      %461 = vmatmul.f32.gmra.mxu0 %v347
      %v462 = vpop.f32.mrf.mxu0
      %v463 = vadd.f32 0.0, %v462
      %464 = vmatmul.f32.gmra.mxu0 %v350
      %v465 = vpop.f32.mrf.mxu0
      %v466 = vadd.f32 0.0, %v465
      %467 = vdwg.mxu0
      %468 = vxpose.xlu0.b32.start [1/16] %v373, 128
      %469 = vxpose.xlu0.b32.cont [2/16] %v376, 128
      %470 = vxpose.xlu0.b32.cont [3/16] %v379, 128
      %471 = vxpose.xlu0.b32.cont [4/16] %v382, 128
      %472 = vxpose.xlu0.b32.cont [5/16] %v385, 128
      %473 = vxpose.xlu0.b32.cont [6/16] %v388, 128
      %474 = vxpose.xlu0.b32.cont [7/16] %v391, 128
      %475 = vxpose.xlu0.b32.cont [8/16] %v394, 128
      %476 = vxpose.xlu0.b32.cont [9/16] %v397, 128
      %477 = vxpose.xlu0.b32.cont [10/16] %v400, 128
      %478 = vxpose.xlu0.b32.cont [11/16] %v403, 128
      %479 = vxpose.xlu0.b32.cont [12/16] %v406, 128
      %480 = vxpose.xlu0.b32.cont [13/16] %v409, 128
      %481 = vxpose.xlu0.b32.cont [14/16] %v412, 128
      %482 = vxpose.xlu0.b32.cont [15/16] %v415, 128
      %483 = vxpose.xlu0.b32.end [16/16] %v418, 128
      %v484 = vpop.trf.xlu0
      %v485 = vpop.trf.xlu0
      %v486 = vpop.trf.xlu0
      %v487 = vpop.trf.xlu0
      %v488 = vpop.trf.xlu0
      %v489 = vpop.trf.xlu0
      %v490 = vpop.trf.xlu0
      %v491 = vpop.trf.xlu0
      %v492 = vpop.trf.xlu0
      %v493 = vpop.trf.xlu0
      %v494 = vpop.trf.xlu0
      %v495 = vpop.trf.xlu0
      %v496 = vpop.trf.xlu0
      %v497 = vpop.trf.xlu0
      %v498 = vpop.trf.xlu0
      %v499 = vpop.trf.xlu0
      %500 = vxpose.xlu0.b32.start [1/16] %v421, 128
      %501 = vxpose.xlu0.b32.cont [2/16] %v424, 128
      %502 = vxpose.xlu0.b32.cont [3/16] %v427, 128
      %503 = vxpose.xlu0.b32.cont [4/16] %v430, 128
      %504 = vxpose.xlu0.b32.cont [5/16] %v433, 128
      %505 = vxpose.xlu0.b32.cont [6/16] %v436, 128
      %506 = vxpose.xlu0.b32.cont [7/16] %v439, 128
      %507 = vxpose.xlu0.b32.cont [8/16] %v442, 128
      %508 = vxpose.xlu0.b32.cont [9/16] %v445, 128
      %509 = vxpose.xlu0.b32.cont [10/16] %v448, 128
      %510 = vxpose.xlu0.b32.cont [11/16] %v451, 128
      %511 = vxpose.xlu0.b32.cont [12/16] %v454, 128
      %512 = vxpose.xlu0.b32.cont [13/16] %v457, 128
      %513 = vxpose.xlu0.b32.cont [14/16] %v460, 128
      %514 = vxpose.xlu0.b32.cont [15/16] %v463, 128
      %515 = vxpose.xlu0.b32.end [16/16] %v466, 128
      %v516 = vpop.trf.xlu0
      %v517 = vpop.trf.xlu0
      %v518 = vpop.trf.xlu0
      %v519 = vpop.trf.xlu0
      %v520 = vpop.trf.xlu0
      %v521 = vpop.trf.xlu0
      %v522 = vpop.trf.xlu0
      %v523 = vpop.trf.xlu0
      %v524 = vpop.trf.xlu0
      %v525 = vpop.trf.xlu0
      %v526 = vpop.trf.xlu0
      %v527 = vpop.trf.xlu0
      %v528 = vpop.trf.xlu0
      %v529 = vpop.trf.xlu0
      %v530 = vpop.trf.xlu0
      %v531 = vpop.trf.xlu0
      %v534 = vrot.slane %v516, 4
      %vm535 = vcmask 1043456
      %v536 = vsel %vm535, %v484, %v534
      %538 = vst [vmem:[%s181] sm:$0xff] %v536
      %s539 = smul.u32 2, %s18
      %p540 = scmp.lt.s32.totalorder %s17, 1
      %s541 = scalar_select %p540, %s17, 1
      %p542 = scmp.lt.s32.totalorder %s539, 1
      %s543 = scalar_select %p542, %s539, 1
      %s544 = smul.addr %s541, 2
      %s545 = sadd.s32 %s543, %s544
      %s546 = smul.addr %s545, 4
      %s547 = scalar_lea.vmem %s2, %s546
      // Predicated region
      $region29: #{inv_conv2d_forward.1} parent=27 // pred_check
        %p548 = pneg %p94
      $region30: #{inv_conv2d_forward.1} parent=27 // pred_check_branch
        %550 = sbr.rel (%p548) target = $region32
      $region31: #{inv_conv2d_forward.1} parent=27 // pred_region
        %s551 = smul.u32 2, %s18
      $region32: #{inv_conv2d_forward.1} parent=27 // pred_fallthru
        _
    $region28: #{inv_conv2d_forward.1} parent=5 // pred_fallthru
      _
    %p552 = scmp.le.s32.totalorder 2, %s8
    // Predicated region
    $region33: #{inv_conv2d_forward.1} parent=5 // pred_check
      %p553 = pneg %p552
    $region34: #{inv_conv2d_forward.1} parent=5 // pred_check_branch
      %555 = sbr.rel (%p553) target = $region36
    $region35: #{inv_conv2d_forward.1} parent=5 // pred_region
      %s556 = ssub.s32 %s8, 2
      // Predicated region
      $region37: #{inv_conv2d_forward.1} parent=35 // pred_check
        %p557 = pneg %p100
      $region38: #{inv_conv2d_forward.1} parent=35 // pred_check_branch
        %559 = sbr.rel (%p557) target = $region40
      $region39: #{inv_conv2d_forward.1} parent=35 // pred_region
        %s560 = smul.u32 2, %s20
        %p561 = scmp.lt.s32.totalorder %s19, 1
        %s562 = scalar_select %p561, %s19, 1
        %p563 = scmp.lt.s32.totalorder %s560, 1
        %s564 = scalar_select %p563, %s560, 1
        %s565 = smul.addr %s562, 2
        %s566 = sadd.s32 %s564, %s565
        %s567 = smul.addr %s566, 4
        %s568 = scalar_lea.vmem %s2, %s567
      $region40: #{inv_conv2d_forward.1} parent=35 // pred_fallthru
        _
    $region36: #{inv_conv2d_forward.1} parent=5 // pred_fallthru
      _
  $region6: #{inv_conv2d_forward.1} parent=0 // loop_footer
    %s12 = sadd.s32 1, %s8
  $region7: #{inv_conv2d_forward.1} parent=0 // loop_footer_branch
    %7 = sbr.rel target = $region3
  $region8: #{inv_conv2d_forward.1} parent=0 // loop_exit
    _

</llo_original>
